<compile_context>
chip_gen: v7x
topology: tpu7x:2x2x1
jax: 0.10.0
libtpu: 0.0.40
codegen_flags: <defaults>
</compile_context>

<pallas_src>
import jax
import jax.numpy as jnp
from jax import lax
from jax.experimental import pallas as pl
from jax.experimental.pallas import tpu as pltpu

EPS = 1e-5


def mlp_time_encode_kernel(feat_ref, t_ref,            # (nf, N), (1, N)
                           wt_ref, bt_ref,             # (Td, 1), (Td, 1)
                           wcf_ref, wct_ref, bc_ref,   # (H1+H3, nf), (H1+H3, Td), (H1+H3, 1)
                           g1_ref, be1_ref,            # (H1, 1)
                           w2_ref, b2_ref, g2_ref, be2_ref,   # (H2, H1), (H2, 1), ...
                           w3t_ref, g3_ref, be3_ref,   # (H3, H2), (H3, 1), (H3, 1)
                           wl_ref, bl_ref,             # (1, H3), (1, 1)
                           o_ref):                     # (1, N)
    feat = feat_ref[...]                 # (nf, N)
    t = t_ref[...]                       # (1, N)

    # ---- Time2Vec (input_dim = 1), transposed: affine = wt * t + bt  -> (Td, N) ----
    affine = wt_ref[...] * t + bt_ref[...]
    row = lax.broadcasted_iota(jnp.int32, affine.shape, 0)
    time_emb = jnp.where(row >= 1, jnp.sin(affine), affine)   # row 0 linear, rest sin

    def bn_relu(z, g, be):
        # Training-mode BN (biased variance), fused affine: one sub, one square,
        # one FMA, one max per element.  Two-pass stats kept for numerical safety.
        mean = jnp.mean(z, axis=1, keepdims=True)          # (H, 1)
        zc = z - mean
        var = jnp.mean(zc * zc, axis=1, keepdims=True)
        scale = g * lax.rsqrt(var + EPS)                   # (H, 1)
        return jnp.maximum(zc * scale + be, 0.0)

    # ---- packed matmul: z1 and the feat/time head of z3 in one pass -------------
    # zc_all = [w1 ; w3_head] @ [feat ; time_emb] + [b1 ; b3]        -> (H1+H3, N)
    zc_all = (jnp.dot(wcf_ref[...], feat, preferred_element_type=jnp.float32)
              + jnp.dot(wct_ref[...], time_emb, preferred_element_type=jnp.float32)
              + bc_ref[...])
    h1_dim = g1_ref.shape[0]
    z1 = zc_all[:h1_dim, :]              # net block 0 pre-activation   (H1, N)
    z3_head = zc_all[h1_dim:, :]         # net_cs block 0 (feat/time part)  (H3, N)

    h1 = bn_relu(z1, g1_ref[...], be1_ref[...])

    # ---- net block 1: Linear(H1 -> H2) ----
    z2 = jnp.dot(w2_ref[...], h1, preferred_element_type=jnp.float32) + b2_ref[...]
    h2 = bn_relu(z2, g2_ref[...], be2_ref[...])

    # ---- net_cs block 0: add the h2 contribution ----
    z3 = z3_head + jnp.dot(w3t_ref[...], h2, preferred_element_type=jnp.float32)
    h3 = bn_relu(z3, g3_ref[...], be3_ref[...])

    # ---- last_block: Linear(H3 -> 1), lane-dense (1, N) store ----
    o_ref[...] = (jnp.dot(wl_ref[...], h3, preferred_element_type=jnp.float32)
                  + bl_ref[...])


def mlp_time_encode(x, params):
    """x: (B, T, F) float32.  Returns (B, T) since output_risk == 1."""
    b, t, f = x.shape
    n = b * t
    nf = f - 1
    td = params["wt"].shape[1]
    in_f = nf + td
    h1 = params["w1"].shape[1]

    x2 = x.reshape(n, f).astype(jnp.float32)
    feat_t = x2[:, :nf].T                # (nf, N)  -- pre-split, no in-kernel lane slice
    time_t = x2[:, nf:].T                # (1, N)

    # Pack w1 and the feat/time head of w3 into one stacked weight (out-major layout).
    w3 = params["w3"]                                            # (in_f + H2, H3)
    wc = jnp.concatenate([params["w1"], w3[:in_f, :]], axis=1)   # (in_f, H1+H3)
    wc_feat = wc[:nf, :].T                                       # (H1+H3, nf)
    wc_time = wc[nf:, :].T                                       # (H1+H3, Td)
    bc = jnp.concatenate([params["b1"], params["b3"]], axis=1).T  # (H1+H3, 1)
    w3_tail = w3[in_f:, :].T                                     # (H3, H2)

    args = (feat_t, time_t,
            params["wt"].T, params["bt"].T,
            wc_feat, wc_time, bc,
            params["g1"].T, params["be1"].T,
            params["w2"].T, params["b2"].T, params["g2"].T, params["be2"].T,
            w3_tail, params["g3"].T, params["be3"].T,
            params["wl"].T, params["bl"].T)

    in_specs = [pl.BlockSpec(a.shape, lambda i: (0, 0)) for a in args]
    out = pl.pallas_call(
        mlp_time_encode_kernel,
        out_shape=jax.ShapeDtypeStruct((1, n), jnp.float32),
        grid=(1,),
        in_specs=in_specs,
        out_specs=pl.BlockSpec((1, n), lambda i: (0, 0)),
        compiler_params=pltpu.CompilerParams(
            dimension_semantics=("arbitrary",),
            vmem_limit_bytes=48 * 1024 * 1024),
    )(*args)
    return out.reshape(b, t)


# ----------------------- pure-JAX reference (for a sanity check) -----------------------
def reference_forward(x, params):
    b, t, f = x.shape
    x2 = x.reshape(-1, f)
    feat, tt = x2[:, :-1], x2[:, -1:]
    affine = tt * params["wt"] + params["bt"]
    time_emb = jnp.concatenate([affine[:, :1], jnp.sin(affine[:, 1:])], axis=-1)
    h = jnp.concatenate([feat, time_emb], axis=-1)

    def block(z, g, be):
        mean = jnp.mean(z, axis=0, keepdims=True)
        var = jnp.mean((z - mean) ** 2, axis=0, keepdims=True)
        return jnp.maximum((z - mean) / jnp.sqrt(var + EPS) * g + be, 0.0)

    h1 = block(h @ params["w1"] + params["b1"], params["g1"], params["be1"])
    h2 = block(h1 @ params["w2"] + params["b2"], params["g2"], params["be2"])
    h3 = block(jnp.concatenate([h, h2], axis=-1) @ params["w3"] + params["b3"],
               params["g3"], params["be3"])
    out = h3 @ params["wl"] + params["bl"]
    return out.reshape(b, t)


# ----------------------- deterministic parameter initialization -----------------------
def init_params(key, in_features, time_dim, num_nodes, num_nodes_cs, output_risk=1):
    ks = list(jax.random.split(key, 16))

    def kaiming(k, fan_in, fan_out):
        # kaiming_normal_(nonlinearity='relu'), stored transposed: (in, out)
        return jax.random.normal(k, (fan_in, fan_out), jnp.float32) * jnp.sqrt(2.0 / fan_in)

    def lin_bias(k, fan_in, fan_out):
        bound = 1.0 / jnp.sqrt(fan_in)
        return jax.random.uniform(k, (1, fan_out), jnp.float32, -bound, bound)

    h1, h2 = num_nodes
    h3 = num_nodes_cs[0]
    p = {}
    # Time2Vec(input_dim=1, embed_dim=time_dim): randn weights/bias of shape (1, time_dim)
    p["wt"] = jax.random.normal(ks[0], (1, time_dim), jnp.float32)
    p["bt"] = jax.random.normal(ks[1], (1, time_dim), jnp.float32)
    # net block 0
    p["w1"] = kaiming(ks[2], in_features, h1)
    p["b1"] = lin_bias(ks[3], in_features, h1)
    p["g1"] = jnp.ones((1, h1), jnp.float32)
    p["be1"] = jnp.zeros((1, h1), jnp.float32)
    # net block 1
    p["w2"] = kaiming(ks[4], h1, h2)
    p["b2"] = lin_bias(ks[5], h1, h2)
    p["g2"] = jnp.ones((1, h2), jnp.float32)
    p["be2"] = jnp.zeros((1, h2), jnp.float32)
    # net_cs block 0: in = in_features + h2
    cs_in = h2 + in_features
    p["w3"] = kaiming(ks[6], cs_in, h3)
    p["b3"] = lin_bias(ks[7], cs_in, h3)
    p["g3"] = jnp.ones((1, h3), jnp.float32)
    p["be3"] = jnp.zeros((1, h3), jnp.float32)
    # last_block
    p["wl"] = jax.random.normal(ks[8], (h3, output_risk), jnp.float32) / jnp.sqrt(h3)
    p["bl"] = lin_bias(ks[9], h3, output_risk)
    return p


if __name__ == "__main__":
    key = jax.random.PRNGKey(0)
    k_x, k_p = jax.random.split(key)

    # Small shapes: batch=4, time_step=32 (N = B*T = 128 -> fully lane-dense output),
    # raw features F=5 (last column is the time value).
    B, T, F = 4, 32, 5
    time_dim = 4
    in_features = F + time_dim - 1          # as in MLPTimeEncode.__init__
    num_nodes = [16, 16]
    num_nodes_cs = [16]

    x = jax.random.normal(k_x, (B, T, F), jnp.float32)
    params = init_params(k_p, in_features, time_dim, num_nodes, num_nodes_cs)

    out = mlp_time_encode(x, params)
    out = jax.block_until_ready(out)

    ref = reference_forward(x, params)
    assert out.shape == (B, T)
    assert jnp.allclose(out, ref, atol=1e-4, rtol=1e-4), "mismatch vs pure-JAX reference"

    # TODO(synk): BatchNorm running-stat updates (module state) are not modeled; forward uses
    # training-mode batch statistics only, matching a fresh module's first forward call.
    print("KERNEL_OK")
</pallas_src>

<mosaic_0001>
module attributes {stable_mosaic.version = 11 : i64} {
  func.func @mlp_time_encode_kernel(%arg0: i32, %arg1: memref<4x128xf32, #tpu.memory_space<vmem>>, %arg2: memref<1x128xf32, #tpu.memory_space<vmem>>, %arg3: memref<4x1xf32, #tpu.memory_space<vmem>>, %arg4: memref<4x1xf32, #tpu.memory_space<vmem>>, %arg5: memref<32x4xf32, #tpu.memory_space<vmem>>, %arg6: memref<32x4xf32, #tpu.memory_space<vmem>>, %arg7: memref<32x1xf32, #tpu.memory_space<vmem>>, %arg8: memref<16x1xf32, #tpu.memory_space<vmem>>, %arg9: memref<16x1xf32, #tpu.memory_space<vmem>>, %arg10: memref<16x16xf32, #tpu.memory_space<vmem>>, %arg11: memref<16x1xf32, #tpu.memory_space<vmem>>, %arg12: memref<16x1xf32, #tpu.memory_space<vmem>>, %arg13: memref<16x1xf32, #tpu.memory_space<vmem>>, %arg14: memref<16x16xf32, #tpu.memory_space<vmem>>, %arg15: memref<16x1xf32, #tpu.memory_space<vmem>>, %arg16: memref<16x1xf32, #tpu.memory_space<vmem>>, %arg17: memref<1x16xf32, #tpu.memory_space<vmem>>, %arg18: memref<1x1xf32, #tpu.memory_space<vmem>>, %arg19: memref<1x128xf32, #tpu.memory_space<vmem>>) attributes {dimension_semantics = [#tpu.dimension_semantics<arbitrary>], iteration_bounds = array<i64: 1>, scalar_prefetch = 0 : i64, scratch_operands = 0 : i64, tpu.core_type = #tpu.core_type<tc>, window_params = [{pipeline_mode = #tpu.pipeline_mode<synchronous>, transform_indices = @transform_0, window_bounds = array<i64: 4, 128>}, {pipeline_mode = #tpu.pipeline_mode<synchronous>, transform_indices = @transform_1, window_bounds = array<i64: 1, 128>}, {pipeline_mode = #tpu.pipeline_mode<synchronous>, transform_indices = @transform_2, window_bounds = array<i64: 4, 1>}, {pipeline_mode = #tpu.pipeline_mode<synchronous>, transform_indices = @transform_3, window_bounds = array<i64: 4, 1>}, {pipeline_mode = #tpu.pipeline_mode<synchronous>, transform_indices = @transform_4, window_bounds = array<i64: 32, 4>}, {pipeline_mode = #tpu.pipeline_mode<synchronous>, transform_indices = @transform_5, window_bounds = array<i64: 32, 4>}, {pipeline_mode = #tpu.pipeline_mode<synchronous>, transform_indices = @transform_6, window_bounds = array<i64: 32, 1>}, {pipeline_mode = #tpu.pipeline_mode<synchronous>, transform_indices = @transform_7, window_bounds = array<i64: 16, 1>}, {pipeline_mode = #tpu.pipeline_mode<synchronous>, transform_indices = @transform_8, window_bounds = array<i64: 16, 1>}, {pipeline_mode = #tpu.pipeline_mode<synchronous>, transform_indices = @transform_9, window_bounds = array<i64: 16, 16>}, {pipeline_mode = #tpu.pipeline_mode<synchronous>, transform_indices = @transform_10, window_bounds = array<i64: 16, 1>}, {pipeline_mode = #tpu.pipeline_mode<synchronous>, transform_indices = @transform_11, window_bounds = array<i64: 16, 1>}, {pipeline_mode = #tpu.pipeline_mode<synchronous>, transform_indices = @transform_12, window_bounds = array<i64: 16, 1>}, {pipeline_mode = #tpu.pipeline_mode<synchronous>, transform_indices = @transform_13, window_bounds = array<i64: 16, 16>}, {pipeline_mode = #tpu.pipeline_mode<synchronous>, transform_indices = @transform_14, window_bounds = array<i64: 16, 1>}, {pipeline_mode = #tpu.pipeline_mode<synchronous>, transform_indices = @transform_15, window_bounds = array<i64: 16, 1>}, {pipeline_mode = #tpu.pipeline_mode<synchronous>, transform_indices = @transform_16, window_bounds = array<i64: 1, 16>}, {pipeline_mode = #tpu.pipeline_mode<synchronous>, transform_indices = @transform_17, window_bounds = array<i64: 1, 1>}, {pipeline_mode = #tpu.pipeline_mode<synchronous>, transform_indices = @transform_18, window_bounds = array<i64: 1, 128>}]} {
    %c0 = arith.constant 0 : index
    %c0_0 = arith.constant 0 : index
    %0 = vector.load %arg1[%c0, %c0_0] : memref<4x128xf32, #tpu.memory_space<vmem>>, vector<4x128xf32>
    %c0_1 = arith.constant 0 : index
    %c0_2 = arith.constant 0 : index
    %1 = vector.load %arg2[%c0_1, %c0_2] : memref<1x128xf32, #tpu.memory_space<vmem>>, vector<1x128xf32>
    %c0_3 = arith.constant 0 : index
    %c0_4 = arith.constant 0 : index
    %2 = vector.load %arg3[%c0_3, %c0_4] : memref<4x1xf32, #tpu.memory_space<vmem>>, vector<4x1xf32>
    %3 = vector.broadcast %2 : vector<4x1xf32> to vector<4x128xf32>
    %4 = vector.broadcast %1 : vector<1x128xf32> to vector<4x128xf32>
    %5 = arith.mulf %3, %4 : vector<4x128xf32>
    %c0_5 = arith.constant 0 : index
    %c0_6 = arith.constant 0 : index
    %6 = vector.load %arg4[%c0_5, %c0_6] : memref<4x1xf32, #tpu.memory_space<vmem>>, vector<4x1xf32>
    %7 = vector.broadcast %6 : vector<4x1xf32> to vector<4x128xf32>
    %8 = arith.addf %5, %7 : vector<4x128xf32>
    %9 = tpu.iota {dimensions = array<i32: 0>} : vector<4x128xi32>
    %c1_i32 = arith.constant 1 : i32
    %10 = vector.broadcast %c1_i32 : i32 to vector<4x128xi32>
    %11 = arith.cmpi sge, %9, %10 : vector<4x128xi32>
    %12 = math.sin %8 : vector<4x128xf32>
    %13 = arith.select %11, %12, %8 : vector<4x128xi1>, vector<4x128xf32>
    %c0_7 = arith.constant 0 : index
    %c0_8 = arith.constant 0 : index
    %14 = vector.load %arg5[%c0_7, %c0_8] : memref<32x4xf32, #tpu.memory_space<vmem>>, vector<32x4xf32>
    %cst = arith.constant dense<0.000000e+00> : vector<32x128xf32>
    %15 = tpu.matmul %14, %0, %cst {dimension_numbers = #tpu.dot_dimension_numbers<[1], [0], [0], [1], [0, 0, 1, 1], [], []>} : vector<32x4xf32>, vector<4x128xf32>, vector<32x128xf32> -> vector<32x128xf32>
    %c0_9 = arith.constant 0 : index
    %c0_10 = arith.constant 0 : index
    %16 = vector.load %arg6[%c0_9, %c0_10] : memref<32x4xf32, #tpu.memory_space<vmem>>, vector<32x4xf32>
    %cst_11 = arith.constant dense<0.000000e+00> : vector<32x128xf32>
    %17 = tpu.matmul %16, %13, %cst_11 {dimension_numbers = #tpu.dot_dimension_numbers<[1], [0], [0], [1], [0, 0, 1, 1], [], []>} : vector<32x4xf32>, vector<4x128xf32>, vector<32x128xf32> -> vector<32x128xf32>
    %18 = arith.addf %15, %17 : vector<32x128xf32>
    %c0_12 = arith.constant 0 : index
    %c0_13 = arith.constant 0 : index
    %19 = vector.load %arg7[%c0_12, %c0_13] : memref<32x1xf32, #tpu.memory_space<vmem>>, vector<32x1xf32>
    %20 = vector.broadcast %19 : vector<32x1xf32> to vector<32x128xf32>
    %21 = arith.addf %18, %20 : vector<32x128xf32>
    %22 = vector.extract_strided_slice %21 {offsets = [0, 0], sizes = [16, 128], strides = [1, 1]} : vector<32x128xf32> to vector<16x128xf32>
    %23 = vector.extract_strided_slice %21 {offsets = [16, 0], sizes = [16, 128], strides = [1, 1]} : vector<32x128xf32> to vector<16x128xf32>
    %c0_14 = arith.constant 0 : index
    %c0_15 = arith.constant 0 : index
    %24 = vector.load %arg8[%c0_14, %c0_15] : memref<16x1xf32, #tpu.memory_space<vmem>>, vector<16x1xf32>
    %c0_16 = arith.constant 0 : index
    %c0_17 = arith.constant 0 : index
    %25 = vector.load %arg9[%c0_16, %c0_17] : memref<16x1xf32, #tpu.memory_space<vmem>>, vector<16x1xf32>
    %cst_18 = arith.constant dense<0.000000e+00> : vector<16xf32>
    %26 = vector.multi_reduction <add>, %22, %cst_18 [1] : vector<16x128xf32> to vector<16xf32>
    %27 = vector.shape_cast %26 : vector<16xf32> to vector<16x1xf32>
    %cst_19 = arith.constant 1.280000e+02 : f32
    %28 = vector.broadcast %cst_19 : f32 to vector<16x1xf32>
    %29 = arith.divf %27, %28 : vector<16x1xf32>
    %30 = vector.broadcast %29 : vector<16x1xf32> to vector<16x128xf32>
    %31 = arith.subf %22, %30 : vector<16x128xf32>
    %32 = arith.mulf %31, %31 : vector<16x128xf32>
    %cst_20 = arith.constant dense<0.000000e+00> : vector<16xf32>
    %33 = vector.multi_reduction <add>, %32, %cst_20 [1] : vector<16x128xf32> to vector<16xf32>
    %34 = vector.shape_cast %33 : vector<16xf32> to vector<16x1xf32>
    %cst_21 = arith.constant 1.280000e+02 : f32
    %35 = vector.broadcast %cst_21 : f32 to vector<16x1xf32>
    %36 = arith.divf %34, %35 : vector<16x1xf32>
    %cst_22 = arith.constant 9.99999974E-6 : f32
    %37 = vector.broadcast %cst_22 : f32 to vector<16x1xf32>
    %38 = arith.addf %36, %37 : vector<16x1xf32>
    %39 = math.rsqrt %38 : vector<16x1xf32>
    %40 = arith.mulf %24, %39 : vector<16x1xf32>
    %41 = vector.broadcast %40 : vector<16x1xf32> to vector<16x128xf32>
    %42 = arith.mulf %31, %41 : vector<16x128xf32>
    %43 = vector.broadcast %25 : vector<16x1xf32> to vector<16x128xf32>
    %44 = arith.addf %42, %43 : vector<16x128xf32>
    %cst_23 = arith.constant 0.000000e+00 : f32
    %45 = vector.broadcast %cst_23 : f32 to vector<16x128xf32>
    %46 = arith.maximumf %44, %45 : vector<16x128xf32>
    %c0_24 = arith.constant 0 : index
    %c0_25 = arith.constant 0 : index
    %47 = vector.load %arg10[%c0_24, %c0_25] : memref<16x16xf32, #tpu.memory_space<vmem>>, vector<16x16xf32>
    %cst_26 = arith.constant dense<0.000000e+00> : vector<16x128xf32>
    %48 = tpu.matmul %47, %46, %cst_26 {dimension_numbers = #tpu.dot_dimension_numbers<[1], [0], [0], [1], [0, 0, 1, 1], [], []>} : vector<16x16xf32>, vector<16x128xf32>, vector<16x128xf32> -> vector<16x128xf32>
    %c0_27 = arith.constant 0 : index
    %c0_28 = arith.constant 0 : index
    %49 = vector.load %arg11[%c0_27, %c0_28] : memref<16x1xf32, #tpu.memory_space<vmem>>, vector<16x1xf32>
    %50 = vector.broadcast %49 : vector<16x1xf32> to vector<16x128xf32>
    %51 = arith.addf %48, %50 : vector<16x128xf32>
    %c0_29 = arith.constant 0 : index
    %c0_30 = arith.constant 0 : index
    %52 = vector.load %arg12[%c0_29, %c0_30] : memref<16x1xf32, #tpu.memory_space<vmem>>, vector<16x1xf32>
    %c0_31 = arith.constant 0 : index
    %c0_32 = arith.constant 0 : index
    %53 = vector.load %arg13[%c0_31, %c0_32] : memref<16x1xf32, #tpu.memory_space<vmem>>, vector<16x1xf32>
    %cst_33 = arith.constant dense<0.000000e+00> : vector<16xf32>
    %54 = vector.multi_reduction <add>, %51, %cst_33 [1] : vector<16x128xf32> to vector<16xf32>
    %55 = vector.shape_cast %54 : vector<16xf32> to vector<16x1xf32>
    %cst_34 = arith.constant 1.280000e+02 : f32
    %56 = vector.broadcast %cst_34 : f32 to vector<16x1xf32>
    %57 = arith.divf %55, %56 : vector<16x1xf32>
    %58 = vector.broadcast %57 : vector<16x1xf32> to vector<16x128xf32>
    %59 = arith.subf %51, %58 : vector<16x128xf32>
    %60 = arith.mulf %59, %59 : vector<16x128xf32>
    %cst_35 = arith.constant dense<0.000000e+00> : vector<16xf32>
    %61 = vector.multi_reduction <add>, %60, %cst_35 [1] : vector<16x128xf32> to vector<16xf32>
    %62 = vector.shape_cast %61 : vector<16xf32> to vector<16x1xf32>
    %cst_36 = arith.constant 1.280000e+02 : f32
    %63 = vector.broadcast %cst_36 : f32 to vector<16x1xf32>
    %64 = arith.divf %62, %63 : vector<16x1xf32>
    %cst_37 = arith.constant 9.99999974E-6 : f32
    %65 = vector.broadcast %cst_37 : f32 to vector<16x1xf32>
    %66 = arith.addf %64, %65 : vector<16x1xf32>
    %67 = math.rsqrt %66 : vector<16x1xf32>
    %68 = arith.mulf %52, %67 : vector<16x1xf32>
    %69 = vector.broadcast %68 : vector<16x1xf32> to vector<16x128xf32>
    %70 = arith.mulf %59, %69 : vector<16x128xf32>
    %71 = vector.broadcast %53 : vector<16x1xf32> to vector<16x128xf32>
    %72 = arith.addf %70, %71 : vector<16x128xf32>
    %cst_38 = arith.constant 0.000000e+00 : f32
    %73 = vector.broadcast %cst_38 : f32 to vector<16x128xf32>
    %74 = arith.maximumf %72, %73 : vector<16x128xf32>
    %c0_39 = arith.constant 0 : index
    %c0_40 = arith.constant 0 : index
    %75 = vector.load %arg14[%c0_39, %c0_40] : memref<16x16xf32, #tpu.memory_space<vmem>>, vector<16x16xf32>
    %cst_41 = arith.constant dense<0.000000e+00> : vector<16x128xf32>
    %76 = tpu.matmul %75, %74, %cst_41 {dimension_numbers = #tpu.dot_dimension_numbers<[1], [0], [0], [1], [0, 0, 1, 1], [], []>} : vector<16x16xf32>, vector<16x128xf32>, vector<16x128xf32> -> vector<16x128xf32>
    %77 = arith.addf %23, %76 : vector<16x128xf32>
    %c0_42 = arith.constant 0 : index
    %c0_43 = arith.constant 0 : index
    %78 = vector.load %arg15[%c0_42, %c0_43] : memref<16x1xf32, #tpu.memory_space<vmem>>, vector<16x1xf32>
    %c0_44 = arith.constant 0 : index
    %c0_45 = arith.constant 0 : index
    %79 = vector.load %arg16[%c0_44, %c0_45] : memref<16x1xf32, #tpu.memory_space<vmem>>, vector<16x1xf32>
    %cst_46 = arith.constant dense<0.000000e+00> : vector<16xf32>
    %80 = vector.multi_reduction <add>, %77, %cst_46 [1] : vector<16x128xf32> to vector<16xf32>
    %81 = vector.shape_cast %80 : vector<16xf32> to vector<16x1xf32>
    %cst_47 = arith.constant 1.280000e+02 : f32
    %82 = vector.broadcast %cst_47 : f32 to vector<16x1xf32>
    %83 = arith.divf %81, %82 : vector<16x1xf32>
    %84 = vector.broadcast %83 : vector<16x1xf32> to vector<16x128xf32>
    %85 = arith.subf %77, %84 : vector<16x128xf32>
    %86 = arith.mulf %85, %85 : vector<16x128xf32>
    %cst_48 = arith.constant dense<0.000000e+00> : vector<16xf32>
    %87 = vector.multi_reduction <add>, %86, %cst_48 [1] : vector<16x128xf32> to vector<16xf32>
    %88 = vector.shape_cast %87 : vector<16xf32> to vector<16x1xf32>
    %cst_49 = arith.constant 1.280000e+02 : f32
    %89 = vector.broadcast %cst_49 : f32 to vector<16x1xf32>
    %90 = arith.divf %88, %89 : vector<16x1xf32>
    %cst_50 = arith.constant 9.99999974E-6 : f32
    %91 = vector.broadcast %cst_50 : f32 to vector<16x1xf32>
    %92 = arith.addf %90, %91 : vector<16x1xf32>
    %93 = math.rsqrt %92 : vector<16x1xf32>
    %94 = arith.mulf %78, %93 : vector<16x1xf32>
    %95 = vector.broadcast %94 : vector<16x1xf32> to vector<16x128xf32>
    %96 = arith.mulf %85, %95 : vector<16x128xf32>
    %97 = vector.broadcast %79 : vector<16x1xf32> to vector<16x128xf32>
    %98 = arith.addf %96, %97 : vector<16x128xf32>
    %cst_51 = arith.constant 0.000000e+00 : f32
    %99 = vector.broadcast %cst_51 : f32 to vector<16x128xf32>
    %100 = arith.maximumf %98, %99 : vector<16x128xf32>
    %c0_52 = arith.constant 0 : index
    %c0_53 = arith.constant 0 : index
    %101 = vector.load %arg17[%c0_52, %c0_53] : memref<1x16xf32, #tpu.memory_space<vmem>>, vector<1x16xf32>
    %cst_54 = arith.constant dense<0.000000e+00> : vector<1x128xf32>
    %102 = tpu.matmul %101, %100, %cst_54 {dimension_numbers = #tpu.dot_dimension_numbers<[1], [0], [0], [1], [0, 0, 1, 1], [], []>} : vector<1x16xf32>, vector<16x128xf32>, vector<1x128xf32> -> vector<1x128xf32>
    %c0_55 = arith.constant 0 : index
    %c0_56 = arith.constant 0 : index
    %103 = vector.load %arg18[%c0_55, %c0_56] : memref<1x1xf32, #tpu.memory_space<vmem>>, vector<1x1xf32>
    %104 = vector.broadcast %103 : vector<1x1xf32> to vector<1x128xf32>
    %105 = arith.addf %102, %104 : vector<1x128xf32>
    %c0_57 = arith.constant 0 : index
    %c0_58 = arith.constant 0 : index
    %106 = vector.load %arg19[%c0_57, %c0_58] : memref<1x128xf32, #tpu.memory_space<vmem>>, vector<1x128xf32>
    tpu.vector_store %arg19[%c0_57, %c0_58], %105 {strides = array<i32>} : memref<1x128xf32, #tpu.memory_space<vmem>>, vector<1x128xf32>,
    return
  }
  func.func @transform_0(%arg0: i32) -> (i32, i32) {
    %c0_i32 = arith.constant 0 : i32
    %c0_i32_0 = arith.constant 0 : i32
    %c0_i32_1 = arith.constant 0 : i32
    return %c0_i32, %c0_i32_0 : i32, i32
  }
  func.func @transform_1(%arg0: i32) -> (i32, i32) {
    %c0_i32 = arith.constant 0 : i32
    %c0_i32_0 = arith.constant 0 : i32
    %c0_i32_1 = arith.constant 0 : i32
    return %c0_i32, %c0_i32_0 : i32, i32
  }
  func.func @transform_2(%arg0: i32) -> (i32, i32) {
    %c0_i32 = arith.constant 0 : i32
    %c0_i32_0 = arith.constant 0 : i32
    %c0_i32_1 = arith.constant 0 : i32
    return %c0_i32, %c0_i32_0 : i32, i32
  }
  func.func @transform_3(%arg0: i32) -> (i32, i32) {
    %c0_i32 = arith.constant 0 : i32
    %c0_i32_0 = arith.constant 0 : i32
    %c0_i32_1 = arith.constant 0 : i32
    return %c0_i32, %c0_i32_0 : i32, i32
  }
  func.func @transform_4(%arg0: i32) -> (i32, i32) {
    %c0_i32 = arith.constant 0 : i32
    %c0_i32_0 = arith.constant 0 : i32
    %c0_i32_1 = arith.constant 0 : i32
    return %c0_i32, %c0_i32_0 : i32, i32
  }
  func.func @transform_5(%arg0: i32) -> (i32, i32) {
    %c0_i32 = arith.constant 0 : i32
    %c0_i32_0 = arith.constant 0 : i32
    %c0_i32_1 = arith.constant 0 : i32
    return %c0_i32, %c0_i32_0 : i32, i32
  }
  func.func @transform_6(%arg0: i32) -> (i32, i32) {
    %c0_i32 = arith.constant 0 : i32
    %c0_i32_0 = arith.constant 0 : i32
    %c0_i32_1 = arith.constant 0 : i32
    return %c0_i32, %c0_i32_0 : i32, i32
  }
  func.func @transform_7(%arg0: i32) -> (i32, i32) {
    %c0_i32 = arith.constant 0 : i32
    %c0_i32_0 = arith.constant 0 : i32
    %c0_i32_1 = arith.constant 0 : i32
    return %c0_i32, %c0_i32_0 : i32, i32
  }
  func.func @transform_8(%arg0: i32) -> (i32, i32) {
    %c0_i32 = arith.constant 0 : i32
    %c0_i32_0 = arith.constant 0 : i32
    %c0_i32_1 = arith.constant 0 : i32
    return %c0_i32, %c0_i32_0 : i32, i32
  }
  func.func @transform_9(%arg0: i32) -> (i32, i32) {
    %c0_i32 = arith.constant 0 : i32
    %c0_i32_0 = arith.constant 0 : i32
    %c0_i32_1 = arith.constant 0 : i32
    return %c0_i32, %c0_i32_0 : i32, i32
  }
  func.func @transform_10(%arg0: i32) -> (i32, i32) {
    %c0_i32 = arith.constant 0 : i32
    %c0_i32_0 = arith.constant 0 : i32
    %c0_i32_1 = arith.constant 0 : i32
    return %c0_i32, %c0_i32_0 : i32, i32
  }
  func.func @transform_11(%arg0: i32) -> (i32, i32) {
    %c0_i32 = arith.constant 0 : i32
    %c0_i32_0 = arith.constant 0 : i32
    %c0_i32_1 = arith.constant 0 : i32
    return %c0_i32, %c0_i32_0 : i32, i32
  }
  func.func @transform_12(%arg0: i32) -> (i32, i32) {
    %c0_i32 = arith.constant 0 : i32
    %c0_i32_0 = arith.constant 0 : i32
    %c0_i32_1 = arith.constant 0 : i32
    return %c0_i32, %c0_i32_0 : i32, i32
  }
  func.func @transform_13(%arg0: i32) -> (i32, i32) {
    %c0_i32 = arith.constant 0 : i32
    %c0_i32_0 = arith.constant 0 : i32
    %c0_i32_1 = arith.constant 0 : i32
    return %c0_i32, %c0_i32_0 : i32, i32
  }
  func.func @transform_14(%arg0: i32) -> (i32, i32) {
    %c0_i32 = arith.constant 0 : i32
    %c0_i32_0 = arith.constant 0 : i32
    %c0_i32_1 = arith.constant 0 : i32
    return %c0_i32, %c0_i32_0 : i32, i32
  }
  func.func @transform_15(%arg0: i32) -> (i32, i32) {
    %c0_i32 = arith.constant 0 : i32
    %c0_i32_0 = arith.constant 0 : i32
    %c0_i32_1 = arith.constant 0 : i32
    return %c0_i32, %c0_i32_0 : i32, i32
  }
  func.func @transform_16(%arg0: i32) -> (i32, i32) {
    %c0_i32 = arith.constant 0 : i32
    %c0_i32_0 = arith.constant 0 : i32
    %c0_i32_1 = arith.constant 0 : i32
    return %c0_i32, %c0_i32_0 : i32, i32
  }
  func.func @transform_17(%arg0: i32) -> (i32, i32) {
    %c0_i32 = arith.constant 0 : i32
    %c0_i32_0 = arith.constant 0 : i32
    %c0_i32_1 = arith.constant 0 : i32
    return %c0_i32, %c0_i32_0 : i32, i32
  }
  func.func @transform_18(%arg0: i32) -> (i32, i32) {
    %c0_i32 = arith.constant 0 : i32
    %c0_i32_0 = arith.constant 0 : i32
    %c0_i32_1 = arith.constant 0 : i32
    return %c0_i32, %c0_i32_0 : i32, i32
  }
}

</mosaic_0001>

<llo_original>
// kernel: tpu_custom_call.1
$region0: #{tpu_custom_call.1}
  #allocation0 [shape = 'u32[]', space=smem, size = 0x4, offset = 0x4, fixed_abs, tag = 'smem constant byte address 0x4 - core index']
  #allocation1 [shape = 'u32[144,128]{1,0:T(1,128)}', space=vmem, size = 0x12000, scoped, tag = 'internal scratch']
  #allocation2 [shape = 'f32[1,1]{1,0:T(1,128)S(1)}', space=vmem, size = 0x200, scoped, tag = 'scoped memory for tpu_custom_call.1']
  %s0 = inlined_call_operand.vmem [shape: f32[4,128], index: 0, kind: input, shape index: {}]
  %s1 = inlined_call_operand.vmem [shape: f32[1,128], index: 1, kind: input, shape index: {}]
  %s2 = inlined_call_operand.vmem [shape: f32[4,1], index: 2, kind: input, shape index: {}]
  %s3 = inlined_call_operand.vmem [shape: f32[4,1], index: 3, kind: input, shape index: {}]
  %s4 = inlined_call_operand.vmem [shape: f32[32,4], index: 4, kind: input, shape index: {}]
  %s5 = inlined_call_operand.vmem [shape: f32[32,4], index: 5, kind: input, shape index: {}]
  %s6 = inlined_call_operand.vmem [shape: f32[32,1], index: 6, kind: input, shape index: {}]
  %s7 = inlined_call_operand.vmem [shape: f32[16,1], index: 7, kind: input, shape index: {}]
  %s8 = inlined_call_operand.vmem [shape: f32[16,1], index: 8, kind: input, shape index: {}]
  %s9 = inlined_call_operand.vmem [shape: f32[16,16], index: 9, kind: input, shape index: {}]
  %s10 = inlined_call_operand.vmem [shape: f32[16,1], index: 10, kind: input, shape index: {}]
  %s11 = inlined_call_operand.vmem [shape: f32[16,1], index: 11, kind: input, shape index: {}]
  %s12 = inlined_call_operand.vmem [shape: f32[16,1], index: 12, kind: input, shape index: {}]
  %s13 = inlined_call_operand.vmem [shape: f32[16,16], index: 13, kind: input, shape index: {}]
  %s14 = inlined_call_operand.vmem [shape: f32[16,1], index: 14, kind: input, shape index: {}]
  %s15 = inlined_call_operand.vmem [shape: f32[16,1], index: 15, kind: input, shape index: {}]
  %s16 = inlined_call_operand.vmem [shape: f32[1,16], index: 16, kind: input, shape index: {}]
  %s17 = inlined_call_operand.<no memory space> [shape: f32[1,1], index: 17, kind: input, shape index: {}]
  %s18 = inlined_call_operand.hbm [shape: f32[1,128], index: 18, kind: output, shape index: {}]
  %s19 = sld [smem:[#allocation0]]
  $region82: #{tpu_custom_call.1} parent=0
    _
  %s21 = ssub.s32 1, %s19
  %s22 = scalar_select 0, %s21, %s19
  %v23 = vstv %s17
  %24 = vst [vmem:[#allocation2] sm:$0x1] %v23
  $region1: #{tpu_custom_call.1} parent=0
    #allocation3 [shape = 'u8[512]{0}', space=vmem, size = 0x400, scoped, tag = 'output window, operand 0, single buffered']
    #allocation4 [shape = 's32[1]{0}', space=sflag, size = 0x4, scoped, tag = 'scoped memory for tpu_custom_call.1']
    %25 = vsyncpa [#allocation4], 0
    // Predicated region
    $region2: #{tpu_custom_call.1} parent=1 // pred_check
      _
    $region3: #{tpu_custom_call.1} parent=1 // pred_check_branch
      %27 = sbr.rel (0) target = $region5
    $region4: #{tpu_custom_call.1} parent=1 // pred_region
      _
    $region5: #{tpu_custom_call.1} parent=1 // pred_fallthru
      _
    // Predicated region
    $region6: #{tpu_custom_call.1} parent=1 // pred_check
      _
    $region7: #{tpu_custom_call.1} parent=1 // pred_check_branch
      %29 = sbr.rel (0) target = $region9
    $region8: #{tpu_custom_call.1} parent=1 // pred_region
      _
    $region9: #{tpu_custom_call.1} parent=1 // pred_fallthru
      _
    // Predicated region
    $region10: #{tpu_custom_call.1} parent=1 // pred_check
      _
    $region11: #{tpu_custom_call.1} parent=1 // pred_check_branch
      %31 = sbr.rel (0) target = $region13
    $region12: #{tpu_custom_call.1} parent=1 // pred_region
      _
    $region13: #{tpu_custom_call.1} parent=1 // pred_fallthru
      _
    // Predicated region
    $region14: #{tpu_custom_call.1} parent=1 // pred_check
      _
    $region15: #{tpu_custom_call.1} parent=1 // pred_check_branch
      %33 = sbr.rel (0) target = $region17
    $region16: #{tpu_custom_call.1} parent=1 // pred_region
      _
    $region17: #{tpu_custom_call.1} parent=1 // pred_fallthru
      _
    // Predicated region
    $region18: #{tpu_custom_call.1} parent=1 // pred_check
      _
    $region19: #{tpu_custom_call.1} parent=1 // pred_check_branch
      %35 = sbr.rel (0) target = $region21
    $region20: #{tpu_custom_call.1} parent=1 // pred_region
      _
    $region21: #{tpu_custom_call.1} parent=1 // pred_fallthru
      _
    // Predicated region
    $region22: #{tpu_custom_call.1} parent=1 // pred_check
      _
    $region23: #{tpu_custom_call.1} parent=1 // pred_check_branch
      %37 = sbr.rel (0) target = $region25
    $region24: #{tpu_custom_call.1} parent=1 // pred_region
      _
    $region25: #{tpu_custom_call.1} parent=1 // pred_fallthru
      _
    // Predicated region
    $region26: #{tpu_custom_call.1} parent=1 // pred_check
      _
    $region27: #{tpu_custom_call.1} parent=1 // pred_check_branch
      %39 = sbr.rel (0) target = $region29
    $region28: #{tpu_custom_call.1} parent=1 // pred_region
      _
    $region29: #{tpu_custom_call.1} parent=1 // pred_fallthru
      _
    // Predicated region
    $region30: #{tpu_custom_call.1} parent=1 // pred_check
      _
    $region31: #{tpu_custom_call.1} parent=1 // pred_check_branch
      %41 = sbr.rel (0) target = $region33
    $region32: #{tpu_custom_call.1} parent=1 // pred_region
      _
    $region33: #{tpu_custom_call.1} parent=1 // pred_fallthru
      _
    // Predicated region
    $region34: #{tpu_custom_call.1} parent=1 // pred_check
      _
    $region35: #{tpu_custom_call.1} parent=1 // pred_check_branch
      %43 = sbr.rel (0) target = $region37
    $region36: #{tpu_custom_call.1} parent=1 // pred_region
      _
    $region37: #{tpu_custom_call.1} parent=1 // pred_fallthru
      _
    // Predicated region
    $region38: #{tpu_custom_call.1} parent=1 // pred_check
      _
    $region39: #{tpu_custom_call.1} parent=1 // pred_check_branch
      %45 = sbr.rel (0) target = $region41
    $region40: #{tpu_custom_call.1} parent=1 // pred_region
      _
    $region41: #{tpu_custom_call.1} parent=1 // pred_fallthru
      _
    // Predicated region
    $region42: #{tpu_custom_call.1} parent=1 // pred_check
      _
    $region43: #{tpu_custom_call.1} parent=1 // pred_check_branch
      %47 = sbr.rel (0) target = $region45
    $region44: #{tpu_custom_call.1} parent=1 // pred_region
      _
    $region45: #{tpu_custom_call.1} parent=1 // pred_fallthru
      _
    // Predicated region
    $region46: #{tpu_custom_call.1} parent=1 // pred_check
      _
    $region47: #{tpu_custom_call.1} parent=1 // pred_check_branch
      %49 = sbr.rel (0) target = $region49
    $region48: #{tpu_custom_call.1} parent=1 // pred_region
      _
    $region49: #{tpu_custom_call.1} parent=1 // pred_fallthru
      _
    // Predicated region
    $region50: #{tpu_custom_call.1} parent=1 // pred_check
      _
    $region51: #{tpu_custom_call.1} parent=1 // pred_check_branch
      %51 = sbr.rel (0) target = $region53
    $region52: #{tpu_custom_call.1} parent=1 // pred_region
      _
    $region53: #{tpu_custom_call.1} parent=1 // pred_fallthru
      _
    // Predicated region
    $region54: #{tpu_custom_call.1} parent=1 // pred_check
      _
    $region55: #{tpu_custom_call.1} parent=1 // pred_check_branch
      %53 = sbr.rel (0) target = $region57
    $region56: #{tpu_custom_call.1} parent=1 // pred_region
      _
    $region57: #{tpu_custom_call.1} parent=1 // pred_fallthru
      _
    // Predicated region
    $region58: #{tpu_custom_call.1} parent=1 // pred_check
      _
    $region59: #{tpu_custom_call.1} parent=1 // pred_check_branch
      %55 = sbr.rel (0) target = $region61
    $region60: #{tpu_custom_call.1} parent=1 // pred_region
      _
    $region61: #{tpu_custom_call.1} parent=1 // pred_fallthru
      _
    // Predicated region
    $region62: #{tpu_custom_call.1} parent=1 // pred_check
      _
    $region63: #{tpu_custom_call.1} parent=1 // pred_check_branch
      %57 = sbr.rel (0) target = $region65
    $region64: #{tpu_custom_call.1} parent=1 // pred_region
      _
    $region65: #{tpu_custom_call.1} parent=1 // pred_fallthru
      _
    // Predicated region
    $region66: #{tpu_custom_call.1} parent=1 // pred_check
      _
    $region67: #{tpu_custom_call.1} parent=1 // pred_check_branch
      %59 = sbr.rel (0) target = $region69
    $region68: #{tpu_custom_call.1} parent=1 // pred_region
      _
    $region69: #{tpu_custom_call.1} parent=1 // pred_fallthru
      _
    // Predicated region
    $region70: #{tpu_custom_call.1} parent=1 // pred_check
      _
    $region71: #{tpu_custom_call.1} parent=1 // pred_check_branch
      %61 = sbr.rel (0) target = $region73
    $region72: #{tpu_custom_call.1} parent=1 // pred_region
      _
    $region73: #{tpu_custom_call.1} parent=1 // pred_fallthru
      _
    %v62 = vld [vmem:[%s0] sm:$0xf]
    %v63 = vld [vmem:[%s1] sm:$0x1]
    %v64 = vld [vmem:[%s2] sm:$0xf]
    %66 = vset.pattern.permute.xlu0 0
    %67 = vperm.xlu0 %66, %v64
    %v68 = vpop.permute.xlu0 %67
    %v71 = vlaneseq
    %v72 = vshrl.u32 %v71, 7
    %v73 = vsub.s32 0, %v72
    %v74 = vrot.slane %v63, %v73
    %v76 = vmul.f32 %v68, %v74
    %v77 = vld [vmem:[%s3] sm:$0xf]
    %79 = vset.pattern.permute.xlu0 0
    %80 = vperm.xlu0 %79, %v77
    %v81 = vpop.permute.xlu0 %80
    %v83 = vadd.f32 %v76, %v81
    %v84 = vlaneseq
    %v85 = vshrl.u32 %v84, 7
    %vm86 = vcmp.ge.s32.totalorder %v85, 1
    %v87 = vand.u32 2147483647, %v83
    %vm88 = vcmp.le.f32.partialorder %v87, 0.7853982
    %vm89 = vcmp.lt.s32.totalorder %v83, 0
    %v90 = vand.u32 %v83, 2139095040
    %v91 = vshrl.u32 %v90, 23
    %v92 = vsub.s32 %v91, 127
    %v93 = vand.u32 2147483647, %v83
    %v94 = vand.u32 %v93, 8388607
    %v95 = vor.u32 %v94, 8388608
    %v96 = vsub.s32 0, %v95
    %v97 = vadd.s32 %v92, 1
    %vm98 = vcmp.gt.s32.totalorder %v97, 0
    %v99 = vsel %vm98, %v97, 0
    %v100 = vshrl.u32 %v99, 5
    %v101 = vand.u32 %v99, 31
    %v102 = vsub.s32 32, %v101
    %v103 = vshrl.u32 683565275, %v102
    %v104 = vshll.u32 683565275, %v101
    %v105 = vshrl.u32 2475754826, %v102
    %v106 = vor.u32 %v104, %v105
    %v107 = vshll.u32 2475754826, %v101
    %v108 = vshrl.u32 2131351028, %v102
    %v109 = vor.u32 %v107, %v108
    %v110 = vshll.u32 2131351028, %v101
    %v111 = vshrl.u32 2102212464, %v102
    %v112 = vor.u32 %v110, %v111
    %v113 = vshll.u32 2102212464, %v101
    %v114 = vshrl.u32 920167782, %v102
    %v115 = vor.u32 %v113, %v114
    %v116 = vshll.u32 920167782, %v101
    %v117 = vshrl.u32 1326507024, %v102
    %v118 = vor.u32 %v116, %v117
    %vm119 = vcmp.lt.s32.totalorder %v100, 1
    %vm120 = vcmp.lt.s32.totalorder %v100, 2
    %vm121 = vcmp.lt.s32.totalorder %v100, 3
    %vm122 = vcmp.lt.s32.totalorder %v100, 4
    %v123 = vsel %vm119, %v103, %v106
    %v124 = vsel %vm122, %v112, 2102212464
    %v125 = vsel %vm121, %v109, %v124
    %v126 = vsel %vm120, %v123, %v125
    %v127 = vsel %vm119, %v106, %v109
    %v128 = vsel %vm122, %v115, 920167782
    %v129 = vsel %vm121, %v112, %v128
    %v130 = vsel %vm120, %v127, %v129
    %v131 = vsel %vm119, %v109, %v112
    %v132 = vsel %vm122, %v118, 1326507024
    %v133 = vsel %vm121, %v115, %v132
    %v134 = vsel %vm120, %v131, %v133
    %v135 = vshll.u32 %v95, 8
    %v136 = vmul.u32.u64.compose %v135, %v134
    %v137 = vextract.low.u32 %v136
    %v138 = vextract.high.u32 %v136
    %v139 = vmul.u32.u64.compose %v135, %v130
    %v140 = vextract.low.u32 %v139
    %v141 = vextract.high.u32 %v139
    %v142 = vmul.u32 %v135, %v126
    %v143 = vadd.s32 %v138, %v140
    %vm144 = vc.u32 %v138, %v140
    %v145 = vadd.s32 %v141, 1
    %v146 = vsel %vm144, %v145, %v141
    %v147 = vadd.s32 %v142, %v146
    %v148 = vadd.s32 %v147, 536870912
    %v149 = vshrl.u32 %v148, 30
    %v150 = vshll.u32 %v149, 30
    %v151 = vsub.s32 %v147, %v150
    %vm152 = vcmp.lt.s32.totalorder %v151, 0
    %v153 = vsub.s32 0, %v151
    %v154 = vsel %vm152, %v153, %v151
    %v155 = vclz %v154
    %v156 = vsub.s32 %v155, 2
    %vm157 = vcmp.gt.s32.totalorder 0, %v156
    %v158 = vsel %vm157, 0, %v156
    %v159 = vsub.s32 32, %v158
    %v160 = vshll.u32 %v151, %v158
    %v161 = vshrl.u32 %v143, %v159
    %v162 = vor.u32 %v160, %v161
    %v163 = vsub.s32 4294967266, %v158
    %v164 = vadd.s32 %v163, 127
    %v165 = vshll.u32 %v164, 23
    %v166 = vor.u32 4788187, %v165
    %v167 = vand.u32 2147483647, %v166
    %v169 = vcvt.s32.f32 %v162
    %v170 = vmul.f32 %v169, %v167
    %v171 = vxor.u32 %v170, 2147483648
    %v172 = vsel %vm89, %v171, %v170
    %v173 = vsub.s32 4, %v149
    %v174 = vsel %vm89, %v173, %v149
    %v175 = vsel %vm88, %v83, %v172
    %v176 = vsel %vm88, 0, %v174
    %v177 = vcosq.f32.pop %v175
    %v178 = vsinq.f32.pop %v175
    %vm179 = vweird.f32 %v83
    %v180 = vadd.s32 %v176, 3
    %v181 = vand.u32 %v180, 3
    %vm182 = vcmp.lt.s32.totalorder %v181, 2
    %vm183 = vcmp.eq.s32.totalorder %v181, 0
    %v184 = vxor.u32 %v178, 2147483648
    %v185 = vsel %vm183, %v177, %v184
    %vm186 = vcmp.eq.s32.totalorder %v181, 2
    %v187 = vxor.u32 %v177, 2147483648
    %v188 = vsel %vm186, %v187, %v178
    %v189 = vsel %vm182, %v185, %v188
    %v190 = vsel %vm179, nan, %v189
    %v191 = vsel %vm86, %v190, %v83
    %v192 = vld [vmem:[%s4] sm:$0xff]
    %v193 = vld [vmem:[%s4 + $0x8] sm:$0xff]
    %v194 = vld [vmem:[%s4 + $0x10] sm:$0xff]
    %v195 = vld [vmem:[%s4 + $0x18] sm:$0xff]
    %v196 = vld [vmem:[%s5] sm:$0xff]
    %v197 = vld [vmem:[%s5 + $0x8] sm:$0xff]
    %v198 = vld [vmem:[%s5 + $0x10] sm:$0xff]
    %v199 = vld [vmem:[%s5 + $0x18] sm:$0xff]
    %vm200 = vcmask 31744
    %v202 = vsel %vm200, %v196, 0
    %v205 = vsel %vm200, %v197, 0
    %v208 = vsel %vm200, %v198, 0
    %v211 = vsel %vm200, %v199, 0
    %vm213 = vcmask 1043456
    %v215 = vsel %vm213, %v191, 0
    %217 = vmatprep.subr.mxu0 0.0
    %218 = vmatpush1.msra.mxu0 %v215
    %219 = vmatprep.subr.mxu0 0.0
    %220 = vmatpush1.msra.mxu0 0.0
    %221 = vmatprep.subr.mxu0 0.0
    %222 = vmatpush1.msra.mxu0 0.0
    %223 = vmatprep.subr.mxu0 0.0
    %224 = vmatpush1.msra.mxu0 0.0
    %225 = vmatprep.subr.mxu0 0.0
    %226 = vmatpush1.msra.mxu0 0.0
    %227 = vmatprep.subr.mxu0 0.0
    %228 = vmatpush1.msra.mxu0 0.0
    %229 = vmatprep.subr.mxu0 0.0
    %230 = vmatpush1.msra.mxu0 0.0
    %231 = vmatprep.subr.mxu0 0.0
    %232 = vmatpush1.msra.mxu0 0.0
    %233 = vmatprep.subr.mxu0 0.0
    %234 = vmatpush1.msra.mxu0 0.0
    %235 = vmatprep.subr.mxu0 0.0
    %236 = vmatpush1.msra.mxu0 0.0
    %237 = vmatprep.subr.mxu0 0.0
    %238 = vmatpush1.msra.mxu0 0.0
    %239 = vmatprep.subr.mxu0 0.0
    %240 = vmatpush1.msra.mxu0 0.0
    %241 = vmatprep.subr.mxu0 0.0
    %242 = vmatpush1.msra.mxu0 0.0
    %243 = vmatprep.subr.mxu0 0.0
    %244 = vmatpush1.msra.mxu0 0.0
    %245 = vmatprep.subr.mxu0 0.0
    %246 = vmatpush1.msra.mxu0 0.0
    %247 = vmatprep.subr.mxu0 0.0
    %248 = vmatpush1.msra.mxu0 0.0
    %249 = vmatprep.subr.mxu0 0.0
    %250 = vmatpush1.msra.mxu0 0.0
    %251 = vmatprep.subr.mxu0 0.0
    %252 = vmatpush1.msra.mxu0 0.0
    %253 = vmatprep.subr.mxu0 0.0
    %254 = vmatpush1.msra.mxu0 0.0
    %255 = vmatprep.subr.mxu0 0.0
    %256 = vmatpush1.msra.mxu0 0.0
    %257 = vmatprep.subr.mxu0 0.0
    %258 = vmatpush1.msra.mxu0 0.0
    %259 = vmatprep.subr.mxu0 0.0
    %260 = vmatpush1.msra.mxu0 0.0
    %261 = vmatprep.subr.mxu0 0.0
    %262 = vmatpush1.msra.mxu0 0.0
    %263 = vmatprep.subr.mxu0 0.0
    %264 = vmatpush1.msra.mxu0 0.0
    %265 = vmatprep.subr.mxu0 0.0
    %266 = vmatpush1.msra.mxu0 0.0
    %267 = vmatprep.subr.mxu0 0.0
    %268 = vmatpush1.msra.mxu0 0.0
    %269 = vmatprep.subr.mxu0 0.0
    %270 = vmatpush1.msra.mxu0 0.0
    %271 = vmatprep.subr.mxu0 0.0
    %272 = vmatpush1.msra.mxu0 0.0
    %273 = vmatprep.subr.mxu0 0.0
    %274 = vmatpush1.msra.mxu0 0.0
    %275 = vmatprep.subr.mxu0 0.0
    %276 = vmatpush1.msra.mxu0 0.0
    %277 = vmatprep.subr.mxu0 0.0
    %278 = vmatpush1.msra.mxu0 0.0
    %279 = vmatprep.subr.mxu0 0.0
    %280 = vmatpush1.msra.mxu0 0.0
    %281 = vmatprep.mubr.f32.mxu0 0.0
    %282 = vmatmul.mubr.f32.gmra.mrb[0].mxu0 %v202
    %v283 = vpop.f32.mrb[0].mxu0
    %v284 = vadd.f32 0.0, %v283
    %v285 = vpop.f32.mrb[0].mxu0
    %286 = vmatprep.mubr.f32.mxu0 0.0
    %287 = vmatmul.mubr.f32.gmra.mrb[0].mxu0 %v205
    %v288 = vpop.f32.mrb[0].mxu0
    %v289 = vadd.f32 0.0, %v288
    %v290 = vpop.f32.mrb[0].mxu0
    %291 = vmatprep.mubr.f32.mxu0 0.0
    %292 = vmatmul.mubr.f32.gmra.mrb[0].mxu0 %v208
    %v293 = vpop.f32.mrb[0].mxu0
    %v294 = vadd.f32 0.0, %v293
    %v295 = vpop.f32.mrb[0].mxu0
    %296 = vmatprep.mubr.f32.mxu0 0.0
    %297 = vmatmul.mubr.f32.gmra.mrb[0].mxu0 %v211
    %v298 = vpop.f32.mrb[0].mxu0
    %v299 = vadd.f32 0.0, %v298
    %v300 = vpop.f32.mrb[0].mxu0
    %301 = vdwg.mxu0
    %v303 = vsel %vm200, %v192, 0
    %v306 = vsel %vm200, %v193, 0
    %v309 = vsel %vm200, %v194, 0
    %v312 = vsel %vm200, %v195, 0
    %v315 = vsel %vm213, %v62, 0
    %317 = vmatprep.subr.mxu0 0.0
    %318 = vmatpush1.msra.mxu0 %v315
    %319 = vmatprep.subr.mxu0 0.0
    %320 = vmatpush1.msra.mxu0 0.0
    %321 = vmatprep.subr.mxu0 0.0
    %322 = vmatpush1.msra.mxu0 0.0
    %323 = vmatprep.subr.mxu0 0.0
    %324 = vmatpush1.msra.mxu0 0.0
    %325 = vmatprep.subr.mxu0 0.0
    %326 = vmatpush1.msra.mxu0 0.0
    %327 = vmatprep.subr.mxu0 0.0
    %328 = vmatpush1.msra.mxu0 0.0
    %329 = vmatprep.subr.mxu0 0.0
    %330 = vmatpush1.msra.mxu0 0.0
    %331 = vmatprep.subr.mxu0 0.0
    %332 = vmatpush1.msra.mxu0 0.0
    %333 = vmatprep.subr.mxu0 0.0
    %334 = vmatpush1.msra.mxu0 0.0
    %335 = vmatprep.subr.mxu0 0.0
    %336 = vmatpush1.msra.mxu0 0.0
    %337 = vmatprep.subr.mxu0 0.0
    %338 = vmatpush1.msra.mxu0 0.0
    %339 = vmatprep.subr.mxu0 0.0
    %340 = vmatpush1.msra.mxu0 0.0
    %341 = vmatprep.subr.mxu0 0.0
    %342 = vmatpush1.msra.mxu0 0.0
    %343 = vmatprep.subr.mxu0 0.0
    %344 = vmatpush1.msra.mxu0 0.0
    %345 = vmatprep.subr.mxu0 0.0
    %346 = vmatpush1.msra.mxu0 0.0
    %347 = vmatprep.subr.mxu0 0.0
    %348 = vmatpush1.msra.mxu0 0.0
    %349 = vmatprep.subr.mxu0 0.0
    %350 = vmatpush1.msra.mxu0 0.0
    %351 = vmatprep.subr.mxu0 0.0
    %352 = vmatpush1.msra.mxu0 0.0
    %353 = vmatprep.subr.mxu0 0.0
    %354 = vmatpush1.msra.mxu0 0.0
    %355 = vmatprep.subr.mxu0 0.0
    %356 = vmatpush1.msra.mxu0 0.0
    %357 = vmatprep.subr.mxu0 0.0
    %358 = vmatpush1.msra.mxu0 0.0
    %359 = vmatprep.subr.mxu0 0.0
    %360 = vmatpush1.msra.mxu0 0.0
    %361 = vmatprep.subr.mxu0 0.0
    %362 = vmatpush1.msra.mxu0 0.0
    %363 = vmatprep.subr.mxu0 0.0
    %364 = vmatpush1.msra.mxu0 0.0
    %365 = vmatprep.subr.mxu0 0.0
    %366 = vmatpush1.msra.mxu0 0.0
    %367 = vmatprep.subr.mxu0 0.0
    %368 = vmatpush1.msra.mxu0 0.0
    %369 = vmatprep.subr.mxu0 0.0
    %370 = vmatpush1.msra.mxu0 0.0
    %371 = vmatprep.subr.mxu0 0.0
    %372 = vmatpush1.msra.mxu0 0.0
    %373 = vmatprep.subr.mxu0 0.0
    %374 = vmatpush1.msra.mxu0 0.0
    %375 = vmatprep.subr.mxu0 0.0
    %376 = vmatpush1.msra.mxu0 0.0
    %377 = vmatprep.subr.mxu0 0.0
    %378 = vmatpush1.msra.mxu0 0.0
    %379 = vmatprep.subr.mxu0 0.0
    %380 = vmatpush1.msra.mxu0 0.0
    %381 = vmatprep.mubr.f32.mxu0 0.0
    %382 = vmatmul.mubr.f32.gmra.mrb[0].mxu0 %v303
    %v383 = vpop.f32.mrb[0].mxu0
    %v384 = vadd.f32 %v284, %v383
    %v385 = vpop.f32.mrb[0].mxu0
    %386 = vmatprep.mubr.f32.mxu0 0.0
    %387 = vmatmul.mubr.f32.gmra.mrb[0].mxu0 %v306
    %v388 = vpop.f32.mrb[0].mxu0
    %v389 = vadd.f32 %v289, %v388
    %v390 = vpop.f32.mrb[0].mxu0
    %391 = vmatprep.mubr.f32.mxu0 0.0
    %392 = vmatmul.mubr.f32.gmra.mrb[0].mxu0 %v309
    %v393 = vpop.f32.mrb[0].mxu0
    %v394 = vadd.f32 %v294, %v393
    %v395 = vpop.f32.mrb[0].mxu0
    %396 = vmatprep.mubr.f32.mxu0 0.0
    %397 = vmatmul.mubr.f32.gmra.mrb[0].mxu0 %v312
    %v398 = vpop.f32.mrb[0].mxu0
    %v399 = vadd.f32 %v299, %v398
    %v400 = vpop.f32.mrb[0].mxu0
    %401 = vdwg.mxu0
    %v402 = vld [vmem:[%s6] sm:$0xff]
    %v403 = vld [vmem:[%s6 + $0x8] sm:$0xff]
    %v404 = vld [vmem:[%s6 + $0x10] sm:$0xff]
    %v405 = vld [vmem:[%s6 + $0x18] sm:$0xff]
    %407 = vset.pattern.permute.xlu0 0
    %408 = vperm.xlu0 %407, %v402
    %v409 = vpop.permute.xlu0 %408
    %412 = vset.pattern.permute.xlu0 0
    %413 = vperm.xlu0 %412, %v403
    %v414 = vpop.permute.xlu0 %413
    %417 = vset.pattern.permute.xlu0 0
    %418 = vperm.xlu0 %417, %v404
    %v419 = vpop.permute.xlu0 %418
    %422 = vset.pattern.permute.xlu0 0
    %423 = vperm.xlu0 %422, %v405
    %v424 = vpop.permute.xlu0 %423
    %v426 = vadd.f32 %v384, %v409
    %v427 = vadd.f32 %v389, %v414
    %v428 = vadd.f32 %v394, %v419
    %v429 = vadd.f32 %v399, %v424
    %v430 = vld [vmem:[%s7] sm:$0xff]
    %v431 = vld [vmem:[%s7 + $0x8] sm:$0xff]
    %v432 = vld [vmem:[%s8] sm:$0xff]
    %v433 = vld [vmem:[%s8 + $0x8] sm:$0xff]
    %434 = vadd.xlane.f32.xlu0 %v426
    %v435 = vpop.xlane.xlu0 %434
    %436 = vadd.xlane.f32.xlu0 %v427
    %v437 = vpop.xlane.xlu0 %436
    %v438 = vrcp.pop 128.0
    %v439 = vmul.f32 %v435, %v438
    %v440 = vmul.f32 %v437, %v438
    %v441 = vsub.f32 %v426, %v439
    %v442 = vsub.f32 %v427, %v440
    %v443 = vmul.f32 %v441, %v441
    %v444 = vmul.f32 %v442, %v442
    %445 = vadd.xlane.f32.xlu0 %v443
    %v446 = vpop.xlane.xlu0 %445
    %447 = vadd.xlane.f32.xlu0 %v444
    %v448 = vpop.xlane.xlu0 %447
    %v449 = vmul.f32 %v446, %v438
    %v450 = vmul.f32 %v448, %v438
    %v451 = vadd.f32 %v449, 1e-05
    %v452 = vadd.f32 %v450, 1e-05
    %v453 = vrsqrt.pop %v451
    %v454 = vrsqrt.pop %v452
    %v455 = vmul.f32 %v430, %v453
    %v456 = vmul.f32 %v431, %v454
    %458 = vset.pattern.permute.xlu0 0
    %459 = vperm.xlu0 %458, %v455
    %v460 = vpop.permute.xlu0 %459
    %463 = vset.pattern.permute.xlu0 0
    %464 = vperm.xlu0 %463, %v456
    %v465 = vpop.permute.xlu0 %464
    %v467 = vmul.f32 %v441, %v460
    %v468 = vmul.f32 %v442, %v465
    %470 = vset.pattern.permute.xlu0 0
    %471 = vperm.xlu0 %470, %v432
    %v472 = vpop.permute.xlu0 %471
    %475 = vset.pattern.permute.xlu0 0
    %476 = vperm.xlu0 %475, %v433
    %v477 = vpop.permute.xlu0 %476
    %v479 = vadd.f32 %v467, %v472
    %v480 = vadd.f32 %v468, %v477
    %v481 = vmax.f32 %v479, 0.0
    %v482 = vmax.f32 %v480, 0.0
    %v483 = vld [vmem:[%s9] sm:$0xff]
    %v484 = vld [vmem:[%s9 + $0x8] sm:$0xff]
    %v485 = vld [vmem:[%s10] sm:$0xff]
    %v486 = vld [vmem:[%s10 + $0x8] sm:$0xff]
    %488 = vset.pattern.permute.xlu0 0
    %489 = vperm.xlu0 %488, %v485
    %v490 = vpop.permute.xlu0 %489
    %493 = vset.pattern.permute.xlu0 0
    %494 = vperm.xlu0 %493, %v486
    %v495 = vpop.permute.xlu0 %494
    %vm497 = vcmask 130048
    %v499 = vsel %vm497, %v483, 0
    %v502 = vsel %vm497, %v484, 0
    %504 = vmatprep.subr.mxu0 0.0
    %505 = vmatpush1.msra.mxu0 %v481
    %506 = vmatprep.subr.mxu0 0.0
    %507 = vmatpush1.msra.mxu0 %v482
    %508 = vmatprep.subr.mxu0 0.0
    %509 = vmatpush1.msra.mxu0 0.0
    %510 = vmatprep.subr.mxu0 0.0
    %511 = vmatpush1.msra.mxu0 0.0
    %512 = vmatprep.subr.mxu0 0.0
    %513 = vmatpush1.msra.mxu0 0.0
    %514 = vmatprep.subr.mxu0 0.0
    %515 = vmatpush1.msra.mxu0 0.0
    %516 = vmatprep.subr.mxu0 0.0
    %517 = vmatpush1.msra.mxu0 0.0
    %518 = vmatprep.subr.mxu0 0.0
    %519 = vmatpush1.msra.mxu0 0.0
    %520 = vmatprep.subr.mxu0 0.0
    %521 = vmatpush1.msra.mxu0 0.0
    %522 = vmatprep.subr.mxu0 0.0
    %523 = vmatpush1.msra.mxu0 0.0
    %524 = vmatprep.subr.mxu0 0.0
    %525 = vmatpush1.msra.mxu0 0.0
    %526 = vmatprep.subr.mxu0 0.0
    %527 = vmatpush1.msra.mxu0 0.0
    %528 = vmatprep.subr.mxu0 0.0
    %529 = vmatpush1.msra.mxu0 0.0
    %530 = vmatprep.subr.mxu0 0.0
    %531 = vmatpush1.msra.mxu0 0.0
    %532 = vmatprep.subr.mxu0 0.0
    %533 = vmatpush1.msra.mxu0 0.0
    %534 = vmatprep.subr.mxu0 0.0
    %535 = vmatpush1.msra.mxu0 0.0
    %536 = vmatprep.subr.mxu0 0.0
    %537 = vmatpush1.msra.mxu0 0.0
    %538 = vmatprep.subr.mxu0 0.0
    %539 = vmatpush1.msra.mxu0 0.0
    %540 = vmatprep.subr.mxu0 0.0
    %541 = vmatpush1.msra.mxu0 0.0
    %542 = vmatprep.subr.mxu0 0.0
    %543 = vmatpush1.msra.mxu0 0.0
    %544 = vmatprep.subr.mxu0 0.0
    %545 = vmatpush1.msra.mxu0 0.0
    %546 = vmatprep.subr.mxu0 0.0
    %547 = vmatpush1.msra.mxu0 0.0
    %548 = vmatprep.subr.mxu0 0.0
    %549 = vmatpush1.msra.mxu0 0.0
    %550 = vmatprep.subr.mxu0 0.0
    %551 = vmatpush1.msra.mxu0 0.0
    %552 = vmatprep.subr.mxu0 0.0
    %553 = vmatpush1.msra.mxu0 0.0
    %554 = vmatprep.subr.mxu0 0.0
    %555 = vmatpush1.msra.mxu0 0.0
    %556 = vmatprep.subr.mxu0 0.0
    %557 = vmatpush1.msra.mxu0 0.0
    %558 = vmatprep.subr.mxu0 0.0
    %559 = vmatpush1.msra.mxu0 0.0
    %560 = vmatprep.subr.mxu0 0.0
    %561 = vmatpush1.msra.mxu0 0.0
    %562 = vmatprep.subr.mxu0 0.0
    %563 = vmatpush1.msra.mxu0 0.0
    %564 = vmatprep.subr.mxu0 0.0
    %565 = vmatpush1.msra.mxu0 0.0
    %566 = vmatprep.subr.mxu0 0.0
    %567 = vmatpush1.msra.mxu0 0.0
    %568 = vmatprep.mubr.f32.mxu0 0.0
    %569 = vmatmul.mubr.f32.gmra.mrb[0].mxu0 %v499
    %v570 = vpop.f32.mrb[0].mxu0
    %v571 = vadd.f32 %v490, %v570
    %v572 = vpop.f32.mrb[0].mxu0
    %573 = vmatprep.mubr.f32.mxu0 0.0
    %574 = vmatmul.mubr.f32.gmra.mrb[0].mxu0 %v502
    %v575 = vpop.f32.mrb[0].mxu0
    %v576 = vadd.f32 %v495, %v575
    %v577 = vpop.f32.mrb[0].mxu0
    %578 = vdwg.mxu0
    %v579 = vld [vmem:[%s11] sm:$0xff]
    %v580 = vld [vmem:[%s11 + $0x8] sm:$0xff]
    %v581 = vld [vmem:[%s12] sm:$0xff]
    %v582 = vld [vmem:[%s12 + $0x8] sm:$0xff]
    %583 = vadd.xlane.f32.xlu0 %v571
    %v584 = vpop.xlane.xlu0 %583
    %585 = vadd.xlane.f32.xlu0 %v576
    %v586 = vpop.xlane.xlu0 %585
    %v587 = vmul.f32 %v584, %v438
    %v588 = vmul.f32 %v586, %v438
    %v589 = vsub.f32 %v571, %v587
    %v590 = vsub.f32 %v576, %v588
    %v591 = vmul.f32 %v589, %v589
    %v592 = vmul.f32 %v590, %v590
    %593 = vadd.xlane.f32.xlu0 %v591
    %v594 = vpop.xlane.xlu0 %593
    %595 = vadd.xlane.f32.xlu0 %v592
    %v596 = vpop.xlane.xlu0 %595
    %v597 = vmul.f32 %v594, %v438
    %v598 = vmul.f32 %v596, %v438
    %v599 = vadd.f32 %v597, 1e-05
    %v600 = vadd.f32 %v598, 1e-05
    %v601 = vrsqrt.pop %v599
    %v602 = vrsqrt.pop %v600
    %v603 = vmul.f32 %v579, %v601
    %v604 = vmul.f32 %v580, %v602
    %606 = vset.pattern.permute.xlu0 0
    %607 = vperm.xlu0 %606, %v603
    %v608 = vpop.permute.xlu0 %607
    %611 = vset.pattern.permute.xlu0 0
    %612 = vperm.xlu0 %611, %v604
    %v613 = vpop.permute.xlu0 %612
    %v615 = vmul.f32 %v589, %v608
    %v616 = vmul.f32 %v590, %v613
    %618 = vset.pattern.permute.xlu0 0
    %619 = vperm.xlu0 %618, %v581
    %v620 = vpop.permute.xlu0 %619
    %623 = vset.pattern.permute.xlu0 0
    %624 = vperm.xlu0 %623, %v582
    %v625 = vpop.permute.xlu0 %624
    %v627 = vadd.f32 %v615, %v620
    %v628 = vadd.f32 %v616, %v625
    %v629 = vmax.f32 %v627, 0.0
    %v630 = vmax.f32 %v628, 0.0
    %v631 = vld [vmem:[%s13] sm:$0xff]
    %v632 = vld [vmem:[%s13 + $0x8] sm:$0xff]
    %v634 = vsel %vm497, %v631, 0
    %v637 = vsel %vm497, %v632, 0
    %639 = vmatprep.subr.mxu0 0.0
    %640 = vmatpush1.msra.mxu0 %v629
    %641 = vmatprep.subr.mxu0 0.0
    %642 = vmatpush1.msra.mxu0 %v630
    %643 = vmatprep.subr.mxu0 0.0
    %644 = vmatpush1.msra.mxu0 0.0
    %645 = vmatprep.subr.mxu0 0.0
    %646 = vmatpush1.msra.mxu0 0.0
    %647 = vmatprep.subr.mxu0 0.0
    %648 = vmatpush1.msra.mxu0 0.0
    %649 = vmatprep.subr.mxu0 0.0
    %650 = vmatpush1.msra.mxu0 0.0
    %651 = vmatprep.subr.mxu0 0.0
    %652 = vmatpush1.msra.mxu0 0.0
    %653 = vmatprep.subr.mxu0 0.0
    %654 = vmatpush1.msra.mxu0 0.0
    %655 = vmatprep.subr.mxu0 0.0
    %656 = vmatpush1.msra.mxu0 0.0
    %657 = vmatprep.subr.mxu0 0.0
    %658 = vmatpush1.msra.mxu0 0.0
    %659 = vmatprep.subr.mxu0 0.0
    %660 = vmatpush1.msra.mxu0 0.0
    %661 = vmatprep.subr.mxu0 0.0
    %662 = vmatpush1.msra.mxu0 0.0
    %663 = vmatprep.subr.mxu0 0.0
    %664 = vmatpush1.msra.mxu0 0.0
    %665 = vmatprep.subr.mxu0 0.0
    %666 = vmatpush1.msra.mxu0 0.0
    %667 = vmatprep.subr.mxu0 0.0
    %668 = vmatpush1.msra.mxu0 0.0
    %669 = vmatprep.subr.mxu0 0.0
    %670 = vmatpush1.msra.mxu0 0.0
    %671 = vmatprep.subr.mxu0 0.0
    %672 = vmatpush1.msra.mxu0 0.0
    %673 = vmatprep.subr.mxu0 0.0
    %674 = vmatpush1.msra.mxu0 0.0
    %675 = vmatprep.subr.mxu0 0.0
    %676 = vmatpush1.msra.mxu0 0.0
    %677 = vmatprep.subr.mxu0 0.0
    %678 = vmatpush1.msra.mxu0 0.0
    %679 = vmatprep.subr.mxu0 0.0
    %680 = vmatpush1.msra.mxu0 0.0
    %681 = vmatprep.subr.mxu0 0.0
    %682 = vmatpush1.msra.mxu0 0.0
    %683 = vmatprep.subr.mxu0 0.0
    %684 = vmatpush1.msra.mxu0 0.0
    %685 = vmatprep.subr.mxu0 0.0
    %686 = vmatpush1.msra.mxu0 0.0
    %687 = vmatprep.subr.mxu0 0.0
    %688 = vmatpush1.msra.mxu0 0.0
    %689 = vmatprep.subr.mxu0 0.0
    %690 = vmatpush1.msra.mxu0 0.0
    %691 = vmatprep.subr.mxu0 0.0
    %692 = vmatpush1.msra.mxu0 0.0
    %693 = vmatprep.subr.mxu0 0.0
    %694 = vmatpush1.msra.mxu0 0.0
    %695 = vmatprep.subr.mxu0 0.0
    %696 = vmatpush1.msra.mxu0 0.0
    %697 = vmatprep.subr.mxu0 0.0
    %698 = vmatpush1.msra.mxu0 0.0
    %699 = vmatprep.subr.mxu0 0.0
    %700 = vmatpush1.msra.mxu0 0.0
    %701 = vmatprep.subr.mxu0 0.0
    %702 = vmatpush1.msra.mxu0 0.0
    %703 = vmatprep.mubr.f32.mxu0 0.0
    %704 = vmatmul.mubr.f32.gmra.mrb[0].mxu0 %v634
    %v705 = vpop.f32.mrb[0].mxu0
    %v706 = vadd.f32 0.0, %v705
    %v707 = vpop.f32.mrb[0].mxu0
    %708 = vmatprep.mubr.f32.mxu0 0.0
    %709 = vmatmul.mubr.f32.gmra.mrb[0].mxu0 %v637
    %v710 = vpop.f32.mrb[0].mxu0
    %v711 = vadd.f32 0.0, %v710
    %v712 = vpop.f32.mrb[0].mxu0
    %713 = vdwg.mxu0
    %v714 = vadd.f32 %v428, %v706
    %v715 = vadd.f32 %v429, %v711
    %v716 = vld [vmem:[%s14] sm:$0xff]
    %v717 = vld [vmem:[%s14 + $0x8] sm:$0xff]
    %v718 = vld [vmem:[%s15] sm:$0xff]
    %v719 = vld [vmem:[%s15 + $0x8] sm:$0xff]
    %720 = vadd.xlane.f32.xlu0 %v714
    %v721 = vpop.xlane.xlu0 %720
    %722 = vadd.xlane.f32.xlu0 %v715
    %v723 = vpop.xlane.xlu0 %722
    %v724 = vmul.f32 %v721, %v438
    %v725 = vmul.f32 %v723, %v438
    %v726 = vsub.f32 %v714, %v724
    %v727 = vsub.f32 %v715, %v725
    %v728 = vmul.f32 %v726, %v726
    %v729 = vmul.f32 %v727, %v727
    %730 = vadd.xlane.f32.xlu0 %v728
    %v731 = vpop.xlane.xlu0 %730
    %732 = vadd.xlane.f32.xlu0 %v729
    %v733 = vpop.xlane.xlu0 %732
    %v734 = vmul.f32 %v731, %v438
    %v735 = vmul.f32 %v733, %v438
    %v736 = vadd.f32 %v734, 1e-05
    %v737 = vadd.f32 %v735, 1e-05
    %v738 = vrsqrt.pop %v736
    %v739 = vrsqrt.pop %v737
    %v740 = vmul.f32 %v716, %v738
    %v741 = vmul.f32 %v717, %v739
    %743 = vset.pattern.permute.xlu0 0
    %744 = vperm.xlu0 %743, %v740
    %v745 = vpop.permute.xlu0 %744
    %748 = vset.pattern.permute.xlu0 0
    %749 = vperm.xlu0 %748, %v741
    %v750 = vpop.permute.xlu0 %749
    %v752 = vmul.f32 %v726, %v745
    %v753 = vmul.f32 %v727, %v750
    %755 = vset.pattern.permute.xlu0 0
    %756 = vperm.xlu0 %755, %v718
    %v757 = vpop.permute.xlu0 %756
    %760 = vset.pattern.permute.xlu0 0
    %761 = vperm.xlu0 %760, %v719
    %v762 = vpop.permute.xlu0 %761
    %v764 = vadd.f32 %v752, %v757
    %v765 = vadd.f32 %v753, %v762
    %v766 = vmax.f32 %v764, 0.0
    %v767 = vmax.f32 %v765, 0.0
    %v768 = vld [vmem:[%s16] sm:$0x1]
    %v769 = vld [vmem:[#allocation2] sm:$0x1]
    %771 = vset.pattern.permute.xlu0 0
    %772 = vperm.xlu0 %771, %v769
    %v773 = vpop.permute.xlu0 %772
    %v775 = vlaneseq
    %v776 = vshrl.u32 %v775, 7
    %v777 = vsub.s32 0, %v776
    %v778 = vrot.slane %v773, %v777
    %v780 = vsel %vm497, %v768, 0
    %782 = vmatprep.subr.mxu0 0.0
    %783 = vmatpush1.msra.mxu0 %v766
    %784 = vmatprep.subr.mxu0 0.0
    %785 = vmatpush1.msra.mxu0 %v767
    %786 = vmatprep.subr.mxu0 0.0
    %787 = vmatpush1.msra.mxu0 0.0
    %788 = vmatprep.subr.mxu0 0.0
    %789 = vmatpush1.msra.mxu0 0.0
    %790 = vmatprep.subr.mxu0 0.0
    %791 = vmatpush1.msra.mxu0 0.0
    %792 = vmatprep.subr.mxu0 0.0
    %793 = vmatpush1.msra.mxu0 0.0
    %794 = vmatprep.subr.mxu0 0.0
    %795 = vmatpush1.msra.mxu0 0.0
    %796 = vmatprep.subr.mxu0 0.0
    %797 = vmatpush1.msra.mxu0 0.0
    %798 = vmatprep.subr.mxu0 0.0
    %799 = vmatpush1.msra.mxu0 0.0
    %800 = vmatprep.subr.mxu0 0.0
    %801 = vmatpush1.msra.mxu0 0.0
    %802 = vmatprep.subr.mxu0 0.0
    %803 = vmatpush1.msra.mxu0 0.0
    %804 = vmatprep.subr.mxu0 0.0
    %805 = vmatpush1.msra.mxu0 0.0
    %806 = vmatprep.subr.mxu0 0.0
    %807 = vmatpush1.msra.mxu0 0.0
    %808 = vmatprep.subr.mxu0 0.0
    %809 = vmatpush1.msra.mxu0 0.0
    %810 = vmatprep.subr.mxu0 0.0
    %811 = vmatpush1.msra.mxu0 0.0
    %812 = vmatprep.subr.mxu0 0.0
    %813 = vmatpush1.msra.mxu0 0.0
    %814 = vmatprep.subr.mxu0 0.0
    %815 = vmatpush1.msra.mxu0 0.0
    %816 = vmatprep.subr.mxu0 0.0
    %817 = vmatpush1.msra.mxu0 0.0
    %818 = vmatprep.subr.mxu0 0.0
    %819 = vmatpush1.msra.mxu0 0.0
    %820 = vmatprep.subr.mxu0 0.0
    %821 = vmatpush1.msra.mxu0 0.0
    %822 = vmatprep.subr.mxu0 0.0
    %823 = vmatpush1.msra.mxu0 0.0
    %824 = vmatprep.subr.mxu0 0.0
    %825 = vmatpush1.msra.mxu0 0.0
    %826 = vmatprep.subr.mxu0 0.0
    %827 = vmatpush1.msra.mxu0 0.0
    %828 = vmatprep.subr.mxu0 0.0
    %829 = vmatpush1.msra.mxu0 0.0
    %830 = vmatprep.subr.mxu0 0.0
    %831 = vmatpush1.msra.mxu0 0.0
    %832 = vmatprep.subr.mxu0 0.0
    %833 = vmatpush1.msra.mxu0 0.0
    %834 = vmatprep.subr.mxu0 0.0
    %835 = vmatpush1.msra.mxu0 0.0
    %836 = vmatprep.subr.mxu0 0.0
    %837 = vmatpush1.msra.mxu0 0.0
    %838 = vmatprep.subr.mxu0 0.0
    %839 = vmatpush1.msra.mxu0 0.0
    %840 = vmatprep.subr.mxu0 0.0
    %841 = vmatpush1.msra.mxu0 0.0
    %842 = vmatprep.subr.mxu0 0.0
    %843 = vmatpush1.msra.mxu0 0.0
    %844 = vmatprep.subr.mxu0 0.0
    %845 = vmatpush1.msra.mxu0 0.0
    %846 = vmatprep.mubr.f32.mxu0 0.0
    %847 = vmatmul.mubr.f32.gmra.mrb[0].mxu0 %v780
    %v848 = vpop.f32.mrb[0].mxu0
    %v849 = vadd.f32 %v778, %v848
    %v850 = vpop.f32.mrb[0].mxu0
    %851 = vdwg.mxu0
    %852 = vst [vmem:[#allocation3] sm:$0x1] %v849
    // Predicated region
    $region74: #{tpu_custom_call.1} parent=1 // pred_check
      _
    $region75: #{tpu_custom_call.1} parent=1 // pred_check_branch
      %854 = sbr.rel (0) target = $region77
    $region76: #{tpu_custom_call.1} parent=1 // pred_region
      %s856 = ssub.s32 16, 16
      %857 = vsyncadd [#allocation4], %s856
      %s859 = sshll.u32 [#allocation3], 4
      %s860 = int_to_ptr.vmem [resolvable:$true] %s859
      %862 = dma.vmem_to_hbm [thread:$0]  %s860, 16, %s18, [#allocation4]
    $region77: #{tpu_custom_call.1} parent=1 // pred_fallthru
      _
    // Predicated region
    $region78: #{tpu_custom_call.1} parent=1 // pred_check
      _
    $region79: #{tpu_custom_call.1} parent=1 // pred_check_branch
      %864 = sbr.rel (0) target = $region81
    $region80: #{tpu_custom_call.1} parent=1 // pred_region
      %865 = dma.done [#allocation4], 16
    $region81: #{tpu_custom_call.1} parent=1 // pred_fallthru
      _
    %866 = vsyncpa [#allocation4], 1

</llo_original>
